<compile_context>
chip_gen: v7x
topology: tpu7x:2x2x1
jax: 0.10.0
libtpu: 0.0.40
codegen_flags: <defaults>
</compile_context>

<pallas_src>
import functools

import numpy as np

import jax
import jax.numpy as jnp
from jax.experimental import pallas as pl
from jax.experimental.pallas import tpu as pltpu


def _heads_multiply_kernel(feats_ref, w_ref, b_ref, o_ref, *, num_encoders):
    """feats_ref: [E, TB, F] VMEM  (batch tile of per-encoder pooled features)
       w_ref:     [E, F]     VMEM  (constant block index -> resident across grid)
       b_ref:     [E]        SMEM  (scalar bias table)
       o_ref:     [1, TB]    lane-dense output tile (batch on lanes)
    """
    prod = None
    for e in range(num_encoders):                      # static unroll; E is tiny
        fe = feats_ref[e].astype(jnp.float32)          # [TB, F]
        we = w_ref[e:e + 1, :].astype(jnp.float32)     # [1, F], broadcasts over TB
        # classifier head: logit_e[t] = <feats[e, t, :], w[e, :]> + b[e]
        # (VPU multiply + lane reduce; deliberately NOT an N=1 MXU matmul)
        logit = jnp.sum(fe * we, axis=-1) + b_ref[e]   # [TB]
        # multiplicative fusion across encoders (x_out *= enc_i(...))
        prod = logit if prod is None else prod * logit
    o_ref[...] = prod[None, :].astype(o_ref.dtype)     # lane-dense store


def _round_up(x, m):
    return -(-x // m) * m


def _pick_batch_tile(batch, num_encoders, feat_dim, itemsize):
    """Rows of the batch processed per grid step.

    - small batches (< 256 rows after 8-row round-up): one block covering the
      whole (padded) batch; the output block's lane dim equals the full array
      dim, so the 128-lane block rule is satisfied without 128-padding.
    - otherwise: a multiple-of-128 tile that (a) divides the 128-padded batch
      (no wasted HBM traffic on a bandwidth-bound kernel), (b) keeps the
      double-buffered feats block within an ~8 MiB budget (headroom under the
      16 MiB v5e scoped-VMEM default), and (c) leaves >= 2 grid steps so both
      v7x TensorCores stream HBM on the "parallel" batch axis.
    """
    b8 = _round_up(batch, 8)
    if b8 < 256:
        return b8
    nblk = _round_up(batch, 128) // 128
    budget = 8 * 1024 * 1024
    cap_k = budget // (2 * num_encoders * feat_dim * itemsize * 128)
    cap_k = max(1, min(4, cap_k))               # tb in [128, 512]
    best = 1
    for k in range(1, min(cap_k, nblk // 2) + 1):
        if nblk % k == 0:
            best = k
    return 128 * best


def ophbackbone_multiply_heads(feats, weights, biases, *, out_dtype=None):
    """Fused classifier heads + multiplicative fusion of OphBackbone_Multiply.

    feats:   [E, B, F]  per-encoder pooled features (bf16 recommended)
    weights: [E, F]     stacked classifier weights (torch Linear(F, 1).weight)
    biases:  [E]        stacked classifier biases
    returns: [B, 1]     y = prod_e (feats[e] @ weights[e] + biases[e])
    """
    E, B, F = feats.shape
    assert weights.shape == (E, F) and biases.shape == (E,)
    out_dtype = out_dtype or feats.dtype

    # TODO(synk): for very large encoder counts (in_dim >> 4), move E onto an
    # "arbitrary" trailing grid axis with a running-product VMEM accumulator
    # instead of shrinking the batch tile; in_dim is 1-2 for this module.
    tb = _pick_batch_tile(B, E, F, feats.dtype.itemsize)
    b_pad = _round_up(B, tb)
    if b_pad != B:
        feats = jnp.pad(feats, ((0, 0), (0, b_pad - B), (0, 0)))
    grid = (b_pad // tb,)

    biases = biases.astype(jnp.float32)          # SMEM scalar table
    kernel = functools.partial(_heads_multiply_kernel, num_encoders=E)

    bytes_accessed = (
        E * b_pad * F * feats.dtype.itemsize
        + E * F * weights.dtype.itemsize
        + E * 4
        + b_pad * np.dtype(out_dtype).itemsize
    )

    out_row = pl.pallas_call(
        kernel,
        out_shape=jax.ShapeDtypeStruct((1, b_pad), out_dtype),
        grid=grid,
        in_specs=[
            # Batch-tiled features; lane dim F (1280 = 10*128) is lane-dense.
            pl.BlockSpec((E, tb, F), lambda i: (0, i, 0)),
            # Small weight table: constant block index -> resident in VMEM for
            # the whole grid (no per-step re-DMA).
            pl.BlockSpec((E, F), lambda i: (0, 0)),
            # Tiny bias table: whole array in SMEM, read as scalars in-kernel.
            pl.BlockSpec(memory_space=pltpu.MemorySpace.SMEM),
        ],
        # Lane-dense output: batch mapped to lanes, reshaped to [B, 1] below.
        out_specs=pl.BlockSpec((1, tb), lambda i: (0, i)),
        compiler_params=pltpu.CompilerParams(
            # Batch tiles are independent -> shard across TensorCores on v7x;
            # harmless on single-TC v5e/v6e.
            dimension_semantics=("parallel",),
            # Explicit scoped-VMEM limit: above the 16 MiB v5e default, well
            # under v7x's 64 MiB physical VMEM; our tiling uses < 12 MiB.
            vmem_limit_bytes=32 * 1024 * 1024,
        ),
        cost_estimate=pl.CostEstimate(
            flops=2 * E * b_pad * F,
            transcendentals=0,
            bytes_accessed=int(bytes_accessed),
        ),
    )(feats, weights, biases)

    return out_row.reshape(b_pad, 1)[:B]


def _reference(feats_f32, weights, biases):
    # Precision-matched reference (f32 elementwise multiply + f32 sum, no MXU).
    logits = jnp.sum(feats_f32 * weights[:, None, :].astype(jnp.float32),
                     axis=-1) + biases[:, None]                               # [E, B]
    return jnp.prod(logits, axis=0)[:, None]                                  # [B, 1]


if __name__ == "__main__":
    key = jax.random.PRNGKey(0)
    k1, k2, k3 = jax.random.split(key, 3)

    # Small shapes consistent with the module: in_dim (= num encoders) = 2,
    # unit_feat_dim = 1280 (EfficientNetV2-S pooled feature dim), batch = 2.
    # (The module's raw input would be x: [B, in_dim, H, W]; the conv trunks
    #  mapping x[:, i:i+1] -> feats[i] are not translated — see TODO above.)
    E, B, F = 2, 2, 1280

    # Pooled features fed in bfloat16: the kernel is HBM-bandwidth bound, so
    # halving the feats bytes ~halves wall clock; math is f32 inside.
    feats = jax.random.normal(k1, (E, B, F), jnp.float32).astype(jnp.bfloat16)
    weights = jax.random.normal(k2, (E, F), jnp.float32) * 0.02
    biases = jax.random.normal(k3, (E,), jnp.float32) * 0.1

    out = ophbackbone_multiply_heads(feats, weights, biases, out_dtype=jnp.float32)
    out = jax.block_until_ready(out)

    ref = _reference(feats.astype(jnp.float32), weights, biases)
    assert out.shape == (B, 1) and out.dtype == jnp.float32
    assert jnp.allclose(out, ref, atol=1e-4, rtol=1e-4), "mismatch vs reference"

    print("KERNEL_OK")
</pallas_src>

<mosaic_0001>
module attributes {stable_mosaic.version = 11 : i64} {
  func.func @_heads_multiply_kernel(%arg0: i32, %arg1: memref<2x8x1280xbf16, #tpu.memory_space<vmem>>, %arg2: memref<2x1280xf32, #tpu.memory_space<vmem>>, %arg3: memref<2xf32, #tpu.memory_space<smem>>, %arg4: memref<1x8xf32, #tpu.memory_space<vmem>>) attributes {dimension_semantics = [#tpu.dimension_semantics<parallel>], iteration_bounds = array<i64: 1>, scalar_prefetch = 0 : i64, scratch_operands = 0 : i64, tpu.core_type = #tpu.core_type<tc>, window_params = [{transform_indices = @transform_0, window_bounds = array<i64: 2, 8, 1280>}, {pipeline_mode = #tpu.pipeline_mode<synchronous>, transform_indices = @transform_1, window_bounds = array<i64: 2, 1280>}, {transform_indices = @transform_2, window_bounds = array<i64: 2>}, {transform_indices = @transform_3, window_bounds = array<i64: 1, 8>}]} {
    %c0 = arith.constant 0 : index
    %c0_0 = arith.constant 0 : index
    %c0_1 = arith.constant 0 : index
    %0 = vector.load %arg1[%c0, %c0_0, %c0_1] : memref<2x8x1280xbf16, #tpu.memory_space<vmem>>, vector<1x8x1280xbf16>
    %1 = vector.shape_cast %0 : vector<1x8x1280xbf16> to vector<8x1280xbf16>
    %2 = arith.extf %1 : vector<8x1280xbf16> to vector<8x1280xf32>
    %c0_2 = arith.constant 0 : index
    %c0_3 = arith.constant 0 : index
    %3 = vector.load %arg2[%c0_2, %c0_3] : memref<2x1280xf32, #tpu.memory_space<vmem>>, vector<1x1280xf32>
    %4 = vector.broadcast %3 : vector<1x1280xf32> to vector<8x1280xf32>
    %5 = arith.mulf %2, %4 : vector<8x1280xf32>
    %cst = arith.constant dense<0.000000e+00> : vector<8xf32>
    %6 = vector.multi_reduction <add>, %5, %cst [1] : vector<8x1280xf32> to vector<8xf32>
    %c0_4 = arith.constant 0 : index
    %7 = memref.load %arg3[%c0_4] : memref<2xf32, #tpu.memory_space<smem>>
    %8 = vector.broadcast %7 : f32 to vector<8xf32>
    %9 = arith.addf %6, %8 : vector<8xf32>
    %c1 = arith.constant 1 : index
    %c0_5 = arith.constant 0 : index
    %c0_6 = arith.constant 0 : index
    %10 = vector.load %arg1[%c1, %c0_5, %c0_6] : memref<2x8x1280xbf16, #tpu.memory_space<vmem>>, vector<1x8x1280xbf16>
    %11 = vector.shape_cast %10 : vector<1x8x1280xbf16> to vector<8x1280xbf16>
    %12 = arith.extf %11 : vector<8x1280xbf16> to vector<8x1280xf32>
    %c1_7 = arith.constant 1 : index
    %c0_8 = arith.constant 0 : index
    %13 = vector.load %arg2[%c1_7, %c0_8] : memref<2x1280xf32, #tpu.memory_space<vmem>>, vector<1x1280xf32>
    %14 = vector.broadcast %13 : vector<1x1280xf32> to vector<8x1280xf32>
    %15 = arith.mulf %12, %14 : vector<8x1280xf32>
    %cst_9 = arith.constant dense<0.000000e+00> : vector<8xf32>
    %16 = vector.multi_reduction <add>, %15, %cst_9 [1] : vector<8x1280xf32> to vector<8xf32>
    %c1_10 = arith.constant 1 : index
    %17 = memref.load %arg3[%c1_10] : memref<2xf32, #tpu.memory_space<smem>>
    %18 = vector.broadcast %17 : f32 to vector<8xf32>
    %19 = arith.addf %16, %18 : vector<8xf32>
    %20 = arith.mulf %9, %19 : vector<8xf32>
    %21 = vector.shape_cast %20 : vector<8xf32> to vector<1x8xf32>
    %c0_11 = arith.constant 0 : index
    %c0_12 = arith.constant 0 : index
    %22 = vector.load %arg4[%c0_11, %c0_12] : memref<1x8xf32, #tpu.memory_space<vmem>>, vector<1x8xf32>
    tpu.vector_store %arg4[%c0_11, %c0_12], %21 {strides = array<i32>} : memref<1x8xf32, #tpu.memory_space<vmem>>, vector<1x8xf32>,
    return
  }
  func.func @transform_0(%arg0: i32) -> (i32, i32, i32) {
    %c0_i32 = arith.constant 0 : i32
    %c0_i32_0 = arith.constant 0 : i32
    %c0_i32_1 = arith.constant 0 : i32
    return %c0_i32, %arg0, %c0_i32_0 : i32, i32, i32
  }
  func.func @transform_1(%arg0: i32) -> (i32, i32) {
    %c0_i32 = arith.constant 0 : i32
    %c0_i32_0 = arith.constant 0 : i32
    %c0_i32_1 = arith.constant 0 : i32
    return %c0_i32, %c0_i32_0 : i32, i32
  }
  func.func @transform_2(%arg0: i32) -> i32 {
    %c0_i32 = arith.constant 0 : i32
    %c0_i32_0 = arith.constant 0 : i32
    return %c0_i32 : i32
  }
  func.func @transform_3(%arg0: i32) -> (i32, i32) {
    %c0_i32 = arith.constant 0 : i32
    %c0_i32_0 = arith.constant 0 : i32
    return %c0_i32, %arg0 : i32, i32
  }
}

</mosaic_0001>

<llo_original>
// kernel: tpu_custom_call.1
$region0: #{tpu_custom_call.1}
  #allocation0 [shape = 'u32[]', space=smem, size = 0x4, offset = 0x4, fixed_abs, tag = 'smem constant byte address 0x4 - core index']
  #allocation1 [shape = 'u32[144,128]{1,0:T(1,128)}', space=vmem, size = 0x12000, scoped, tag = 'internal scratch']
  %s0 = inlined_call_operand.hbm [shape: bf16[2,8,1280], index: 0, kind: input, shape index: {}]
  %s1 = inlined_call_operand.hbm [shape: f32[2,1280], index: 1, kind: input, shape index: {}]
  %s2 = inlined_call_operand.vmem [shape: f32[2], index: 2, kind: input, shape index: {}]
  %s3 = inlined_call_operand.hbm [shape: f32[1,8], index: 3, kind: output, shape index: {}]
  %s4 = sld [smem:[#allocation0]]
  $region34: #{tpu_custom_call.1} parent=0
    _
  %s6 = ssub.s32 1, %s4
  %s7 = scalar_select 0, %s6, %s4
  $region1: #{tpu_custom_call.1} parent=0
    #allocation2 [shape = 'u8[40960]{0}', space=vmem, size = 0xa000, scoped, tag = 'input window, operand 0, single buffered']
    #allocation3 [shape = 's32[1]{0}', space=sflag, size = 0x4, scoped, tag = 'scoped memory for tpu_custom_call.1']
    #allocation4 [shape = 's32[1]{0}', space=sflag, size = 0x4, scoped, tag = 'scoped memory for tpu_custom_call.1']
    #allocation5 [shape = 's32[1]{0}', space=sflag, size = 0x4, scoped, tag = 'scoped memory for tpu_custom_call.1']
    #allocation6 [shape = 'u8[10240]{0}', space=vmem, size = 0x2800, scoped, tag = 'input window, operand 1, single buffered']
    #allocation7 [shape = 's32[1]{0}', space=sflag, size = 0x4, scoped, tag = 'scoped memory for tpu_custom_call.1']
    #allocation8 [shape = 'u8[512]{0}', space=smem, size = 0x200, scoped, tag = 'input window, operand 2, single buffered']
    #allocation9 [shape = 'u8[512]{0}', space=vmem, size = 0x400, scoped, tag = 'output window, operand 0, single buffered']
    %8 = vsyncpa [#allocation3], 0
    %9 = vsyncpa [#allocation7], 0
    %10 = vsyncpa [#allocation5], 0
    %11 = vsyncpa [#allocation4], 0
    // Predicated region
    $region2: #{tpu_custom_call.1} parent=1 // pred_check
      _
    $region3: #{tpu_custom_call.1} parent=1 // pred_check_branch
      %13 = sbr.rel (0) target = $region5
    $region4: #{tpu_custom_call.1} parent=1 // pred_region
      %s15 = ssub.s32 1280, 1280
      %16 = vsyncadd [#allocation3], %s15
      %s17 = sshll.u32 [#allocation2], 4
      %s18 = int_to_ptr.vmem [resolvable:$true] %s17
      %23 = dma.hbm_to_vmem [thread:$0]  %s0, 1280, %s18, [#allocation3], 640, 640, 40
    $region5: #{tpu_custom_call.1} parent=1 // pred_fallthru
      _
    // Predicated region
    $region6: #{tpu_custom_call.1} parent=1 // pred_check
      _
    $region7: #{tpu_custom_call.1} parent=1 // pred_check_branch
      %25 = sbr.rel (0) target = $region9
    $region8: #{tpu_custom_call.1} parent=1 // pred_region
      %s27 = ssub.s32 320, 320
      %28 = vsyncadd [#allocation7], %s27
      %s30 = sshll.u32 [#allocation6], 4
      %s31 = int_to_ptr.vmem [resolvable:$true] %s30
      %33 = dma.hbm_to_vmem [thread:$0]  %s1, 320, %s31, [#allocation7]
    $region9: #{tpu_custom_call.1} parent=1 // pred_fallthru
      _
    // Predicated region
    $region10: #{tpu_custom_call.1} parent=1 // pred_check
      _
    $region11: #{tpu_custom_call.1} parent=1 // pred_check_branch
      %35 = sbr.rel (0) target = $region13
    $region12: #{tpu_custom_call.1} parent=1 // pred_region
      %s37 = ssub.s32 16, 16
      %38 = vsyncadd [#allocation5], %s37
      %s40 = sshll.u32 %s2, 4
      %s41 = int_to_ptr.vmem [resolvable:$true] %s40
      %43 = dma.vmem_to_smem %s41, 16, [#allocation8], [#allocation5]
    $region13: #{tpu_custom_call.1} parent=1 // pred_fallthru
      _
    // Predicated region
    $region14: #{tpu_custom_call.1} parent=1 // pred_check
      _
    $region15: #{tpu_custom_call.1} parent=1 // pred_check_branch
      %45 = sbr.rel (0) target = $region17
    $region16: #{tpu_custom_call.1} parent=1 // pred_region
      %46 = dma.done [#allocation3], 1280
    $region17: #{tpu_custom_call.1} parent=1 // pred_fallthru
      _
    // Predicated region
    $region18: #{tpu_custom_call.1} parent=1 // pred_check
      _
    $region19: #{tpu_custom_call.1} parent=1 // pred_check_branch
      %48 = sbr.rel (0) target = $region21
    $region20: #{tpu_custom_call.1} parent=1 // pred_region
      %49 = dma.done [#allocation7], 320
    $region21: #{tpu_custom_call.1} parent=1 // pred_fallthru
      _
    // Predicated region
    $region22: #{tpu_custom_call.1} parent=1 // pred_check
      _
    $region23: #{tpu_custom_call.1} parent=1 // pred_check_branch
      %51 = sbr.rel (0) target = $region25
    $region24: #{tpu_custom_call.1} parent=1 // pred_region
      %52 = dma.done [#allocation5], 16
    $region25: #{tpu_custom_call.1} parent=1 // pred_fallthru
      _
    %53 = sfence
    %v54 = vld [vmem:[#allocation2] sm:$0xff]
    %v55 = vld [vmem:[#allocation2 + $0x8] sm:$0xff]
    %v56 = vld [vmem:[#allocation2 + $0x10] sm:$0xff]
    %v57 = vld [vmem:[#allocation2 + $0x18] sm:$0xff]
    %v58 = vld [vmem:[#allocation2 + $0x20] sm:$0xff]
    %v59 = vunpack.c.l.bf16 %v54
    %v60 = vunpack.c.h.bf16 %v54
    %v61 = vunpack.c.l.bf16 %v55
    %v62 = vunpack.c.h.bf16 %v55
    %v63 = vunpack.c.l.bf16 %v56
    %v64 = vunpack.c.h.bf16 %v56
    %v65 = vunpack.c.l.bf16 %v57
    %v66 = vunpack.c.h.bf16 %v57
    %v67 = vunpack.c.l.bf16 %v58
    %v68 = vunpack.c.h.bf16 %v58
    %v69 = vld [vmem:[#allocation6] ss:$2 sm:$0xff]
    %s70 = scalar_lea.vmem [#allocation6], 16
    %v71 = vld [vmem:[%s70] ss:$2 sm:$0x3]
    %v74 = vlaneseq
    %v75 = vshrl.u32 %v74, 7
    %v76 = vsub.s32 0, %v75
    %v77 = vrot.slane %v69, %v76
    %v78 = vlaneseq
    %v79 = vshrl.u32 %v78, 7
    %v80 = vsub.s32 1, %v79
    %v81 = vrot.slane %v69, %v80
    %v82 = vlaneseq
    %v83 = vshrl.u32 %v82, 7
    %v84 = vsub.s32 2, %v83
    %v85 = vrot.slane %v69, %v84
    %v86 = vlaneseq
    %v87 = vshrl.u32 %v86, 7
    %v88 = vsub.s32 3, %v87
    %v89 = vrot.slane %v69, %v88
    %v90 = vlaneseq
    %v91 = vshrl.u32 %v90, 7
    %v92 = vsub.s32 4, %v91
    %v93 = vrot.slane %v69, %v92
    %v94 = vlaneseq
    %v95 = vshrl.u32 %v94, 7
    %v96 = vsub.s32 5, %v95
    %v97 = vrot.slane %v69, %v96
    %v98 = vlaneseq
    %v99 = vshrl.u32 %v98, 7
    %v100 = vsub.s32 6, %v99
    %v101 = vrot.slane %v69, %v100
    %v102 = vlaneseq
    %v103 = vshrl.u32 %v102, 7
    %v104 = vsub.s32 7, %v103
    %v105 = vrot.slane %v69, %v104
    %v106 = vlaneseq
    %v107 = vshrl.u32 %v106, 7
    %v108 = vsub.s32 0, %v107
    %v109 = vrot.slane %v71, %v108
    %v110 = vlaneseq
    %v111 = vshrl.u32 %v110, 7
    %v112 = vsub.s32 1, %v111
    %v113 = vrot.slane %v71, %v112
    %v124 = vmul.f32 %v59, %v77
    %v125 = vmul.f32 %v60, %v81
    %v126 = vmul.f32 %v61, %v85
    %v127 = vmul.f32 %v62, %v89
    %v128 = vmul.f32 %v63, %v93
    %v129 = vmul.f32 %v64, %v97
    %v130 = vmul.f32 %v65, %v101
    %v131 = vmul.f32 %v66, %v105
    %v132 = vmul.f32 %v67, %v109
    %v133 = vmul.f32 %v68, %v113
    %v134 = vadd.f32 %v124, %v125
    %v135 = vadd.f32 %v134, %v126
    %v136 = vadd.f32 %v135, %v127
    %v137 = vadd.f32 %v136, %v128
    %v138 = vadd.f32 %v137, %v129
    %v139 = vadd.f32 %v138, %v130
    %v140 = vadd.f32 %v139, %v131
    %v141 = vadd.f32 %v140, %v132
    %v142 = vadd.f32 %v141, %v133
    %143 = vadd.xlane.f32.xlu0 %v142
    %v144 = vpop.xlane.xlu0 %143
    %s145 = sld [smem:[#allocation8]]
    %v146 = vstv %s145
    %v147 = vadd.f32 %v144, %v146
    %s148 = scalar_lea.vmem [#allocation2], 40
    %v149 = vld [vmem:[%s148] sm:$0xff]
    %v150 = vld [vmem:[%s148 + $0x8] sm:$0xff]
    %v151 = vld [vmem:[%s148 + $0x10] sm:$0xff]
    %v152 = vld [vmem:[%s148 + $0x18] sm:$0xff]
    %v153 = vld [vmem:[%s148 + $0x20] sm:$0xff]
    %v154 = vunpack.c.l.bf16 %v149
    %v155 = vunpack.c.h.bf16 %v149
    %v156 = vunpack.c.l.bf16 %v150
    %v157 = vunpack.c.h.bf16 %v150
    %v158 = vunpack.c.l.bf16 %v151
    %v159 = vunpack.c.h.bf16 %v151
    %v160 = vunpack.c.l.bf16 %v152
    %v161 = vunpack.c.h.bf16 %v152
    %v162 = vunpack.c.l.bf16 %v153
    %v163 = vunpack.c.h.bf16 %v153
    %s164 = scalar_lea.vmem [#allocation6], 1
    %v165 = vld [vmem:[%s164] ss:$2 sm:$0xff]
    %s166 = scalar_lea.vmem [#allocation6], 17
    %v167 = vld [vmem:[%s166] ss:$2 sm:$0x3]
    %v170 = vlaneseq
    %v171 = vshrl.u32 %v170, 7
    %v172 = vsub.s32 0, %v171
    %v173 = vrot.slane %v165, %v172
    %v174 = vlaneseq
    %v175 = vshrl.u32 %v174, 7
    %v176 = vsub.s32 1, %v175
    %v177 = vrot.slane %v165, %v176
    %v178 = vlaneseq
    %v179 = vshrl.u32 %v178, 7
    %v180 = vsub.s32 2, %v179
    %v181 = vrot.slane %v165, %v180
    %v182 = vlaneseq
    %v183 = vshrl.u32 %v182, 7
    %v184 = vsub.s32 3, %v183
    %v185 = vrot.slane %v165, %v184
    %v186 = vlaneseq
    %v187 = vshrl.u32 %v186, 7
    %v188 = vsub.s32 4, %v187
    %v189 = vrot.slane %v165, %v188
    %v190 = vlaneseq
    %v191 = vshrl.u32 %v190, 7
    %v192 = vsub.s32 5, %v191
    %v193 = vrot.slane %v165, %v192
    %v194 = vlaneseq
    %v195 = vshrl.u32 %v194, 7
    %v196 = vsub.s32 6, %v195
    %v197 = vrot.slane %v165, %v196
    %v198 = vlaneseq
    %v199 = vshrl.u32 %v198, 7
    %v200 = vsub.s32 7, %v199
    %v201 = vrot.slane %v165, %v200
    %v202 = vlaneseq
    %v203 = vshrl.u32 %v202, 7
    %v204 = vsub.s32 0, %v203
    %v205 = vrot.slane %v167, %v204
    %v206 = vlaneseq
    %v207 = vshrl.u32 %v206, 7
    %v208 = vsub.s32 1, %v207
    %v209 = vrot.slane %v167, %v208
    %v220 = vmul.f32 %v154, %v173
    %v221 = vmul.f32 %v155, %v177
    %v222 = vmul.f32 %v156, %v181
    %v223 = vmul.f32 %v157, %v185
    %v224 = vmul.f32 %v158, %v189
    %v225 = vmul.f32 %v159, %v193
    %v226 = vmul.f32 %v160, %v197
    %v227 = vmul.f32 %v161, %v201
    %v228 = vmul.f32 %v162, %v205
    %v229 = vmul.f32 %v163, %v209
    %v230 = vadd.f32 %v220, %v221
    %v231 = vadd.f32 %v230, %v222
    %v232 = vadd.f32 %v231, %v223
    %v233 = vadd.f32 %v232, %v224
    %v234 = vadd.f32 %v233, %v225
    %v235 = vadd.f32 %v234, %v226
    %v236 = vadd.f32 %v235, %v227
    %v237 = vadd.f32 %v236, %v228
    %v238 = vadd.f32 %v237, %v229
    %239 = vadd.xlane.f32.xlu0 %v238
    %v240 = vpop.xlane.xlu0 %239
    %s241 = sld [smem:[#allocation8 + $0x1]]
    %v242 = vstv %s241
    %v243 = vadd.f32 %v240, %v242
    %v244 = vmul.f32 %v147, %v243
    %v246 = vlaneseq
    %v247 = vand.u32 %v246, 127
    %v248 = vlaneseq
    %v249 = vshrl.u32 %v248, 7
    %v250 = vsub.s32 %v247, %v249
    %v251 = vrot.slane %v244, %v250
    %vm253 = vcmask 57344
    %254 = vst.msk [vmem:[#allocation9] sm:$0x1] %vm253, %v251
    // Predicated region
    $region26: #{tpu_custom_call.1} parent=1 // pred_check
      _
    $region27: #{tpu_custom_call.1} parent=1 // pred_check_branch
      %256 = sbr.rel (0) target = $region29
    $region28: #{tpu_custom_call.1} parent=1 // pred_region
      %s258 = ssub.s32 16, 16
      %259 = vsyncadd [#allocation4], %s258
      %s261 = sshll.u32 [#allocation9], 4
      %s262 = int_to_ptr.vmem [resolvable:$true] %s261
      %264 = dma.vmem_to_hbm [thread:$0]  %s262, 16, %s3, [#allocation4]
    $region29: #{tpu_custom_call.1} parent=1 // pred_fallthru
      _
    // Predicated region
    $region30: #{tpu_custom_call.1} parent=1 // pred_check
      _
    $region31: #{tpu_custom_call.1} parent=1 // pred_check_branch
      %266 = sbr.rel (0) target = $region33
    $region32: #{tpu_custom_call.1} parent=1 // pred_region
      %267 = dma.done [#allocation4], 16
    $region33: #{tpu_custom_call.1} parent=1 // pred_fallthru
      _
    %268 = vsyncpa [#allocation3], 1
    %269 = vsyncpa [#allocation7], 1
    %270 = vsyncpa [#allocation4], 1
    %271 = vsyncpa [#allocation5], 1

</llo_original>
